<compile_context>
chip_gen: v6e
topology: v6e:2x2x1
jax: 0.10.0
libtpu: 0.0.40
codegen_flags: <defaults>
</compile_context>

<pallas_src>
import functools

import jax
import jax.numpy as jnp
from jax import lax
from jax.experimental import pallas as pl
from jax.experimental.pallas import tpu as pltpu


# ---------------------------------------------------------------------------
# Interpolation weight matrices (plain JAX, built once per shape at trace time)
# ---------------------------------------------------------------------------
def _bilinear_weight_matrix(out_size: int, in_size: int,
                            dtype=jnp.float32) -> jnp.ndarray:
    """A (out_size, in_size) matching torch bilinear, align_corners=False."""
    scale = in_size / out_size
    dst = jnp.arange(out_size, dtype=jnp.float32)
    src = (dst + 0.5) * scale - 0.5
    src = jnp.maximum(src, 0.0)                       # torch clamps below at 0
    i0 = jnp.floor(src).astype(jnp.int32)
    i0 = jnp.minimum(i0, in_size - 1)
    i1 = jnp.minimum(i0 + 1, in_size - 1)
    w1 = src - i0.astype(jnp.float32)
    w0 = 1.0 - w1
    cols = jnp.arange(in_size, dtype=jnp.int32)
    a = (w0[:, None] * (cols[None, :] == i0[:, None]).astype(jnp.float32)
         + w1[:, None] * (cols[None, :] == i1[:, None]).astype(jnp.float32))
    return a.astype(dtype)


def _nearest_weight_matrix(out_size: int, in_size: int, exact: bool,
                           dtype=jnp.float32) -> jnp.ndarray:
    """A (out_size, in_size) for 'nearest' (legacy floor) or 'nearest-exact'."""
    scale = in_size / out_size
    dst = jnp.arange(out_size, dtype=jnp.float32)
    if exact:  # torch nearest-exact: floor((dst + 0.5) * scale)
        idx = jnp.floor((dst + 0.5) * scale).astype(jnp.int32)
    else:      # torch legacy nearest: floor(dst * scale)
        idx = jnp.floor(dst * scale).astype(jnp.int32)
    idx = jnp.clip(idx, 0, in_size - 1)
    cols = jnp.arange(in_size, dtype=jnp.int32)
    return (cols[None, :] == idx[:, None]).astype(dtype)


# ---------------------------------------------------------------------------
# Pallas kernel: TB planes per grid step, per-plane two-matmul resize
# ---------------------------------------------------------------------------
def _resize_kernel(ah_ref, awt_ref, x_ref, o_ref, tmp_ref, *,
                   tb: int, w_first: bool):
    # ah_ref : (out_H, in_H)      resident row-interpolation matrix
    # awt_ref: (in_W, out_W)      resident col-interpolation matrix (transposed)
    # x_ref  : (TB, in_H, in_W)   TB input planes (plane p is tile-aligned)
    # o_ref  : (TB, out_H, out_W)
    # tmp_ref: per-plane intermediate in the compute dtype
    cdt = ah_ref.dtype

    def plane(p, carry):
        xp = x_ref[p].astype(cdt)                              # (in_H, in_W)
        if w_first:
            tmp_ref[...] = jnp.dot(
                xp, awt_ref[...],
                preferred_element_type=jnp.float32).astype(tmp_ref.dtype)
            o_ref[p] = jnp.dot(
                ah_ref[...], tmp_ref[...],
                preferred_element_type=jnp.float32).astype(o_ref.dtype)
        else:
            tmp_ref[...] = jnp.dot(
                ah_ref[...], xp,
                preferred_element_type=jnp.float32).astype(tmp_ref.dtype)
            o_ref[p] = jnp.dot(
                tmp_ref[...], awt_ref[...],
                preferred_element_type=jnp.float32).astype(o_ref.dtype)
        return carry

    lax.fori_loop(0, tb, plane, 0)


# ---------------------------------------------------------------------------
# Sizing helpers
# ---------------------------------------------------------------------------
def _ceil_to(v: int, m: int) -> int:
    return ((v + m - 1) // m) * m


def _vmem_tile_bytes(rows: int, cols: int, dtype) -> int:
    """VMEM footprint of one (rows, cols) buffer after (sublane, 128) padding."""
    it = jnp.dtype(dtype).itemsize
    sub = 8 * max(1, 4 // it)            # f32: 8 sublanes, bf16: 16, int8: 32
    return _ceil_to(max(rows, 1), sub) * _ceil_to(max(cols, 1), 128) * it


def _tpu_vmem_capacity_bytes() -> int:
    try:
        return int(pltpu.get_tpu_info().vmem_capacity_bytes)
    except Exception:
        return 64 * 2**20                # conservative fallback (v7x per-core)


@functools.lru_cache(maxsize=1)
def _single_buffer_weights_supported() -> bool:
    """Probe pipeline_mode=pl.Buffered(1) (single-buffered resident inputs)."""
    try:
        def _copy(a_ref, o_ref, tmp_ref):
            tmp_ref[...] = a_ref[...]
            o_ref[...] = tmp_ref[...]

        probe = pl.pallas_call(
            _copy,
            out_shape=jax.ShapeDtypeStruct((16, 128), jnp.float32),
            grid_spec=pltpu.PrefetchScalarGridSpec(
                num_scalar_prefetch=0,
                grid=(2,),
                in_specs=[pl.BlockSpec((8, 128), lambda i: (0, 0),
                                       pipeline_mode=pl.Buffered(1))],
                out_specs=pl.BlockSpec((8, 128), lambda i: (i, 0)),
                scratch_shapes=[pltpu.VMEM((8, 128), jnp.float32)]),
        )
        jax.block_until_ready(probe(jnp.zeros((8, 128), jnp.float32)))
        return True
    except Exception:
        return False


# ---------------------------------------------------------------------------
# Wrapper
# ---------------------------------------------------------------------------
@functools.partial(
    jax.jit,
    static_argnames=("height", "width", "interpolation_mode",
                     "single_buffer_weights", "max_planes_per_block"))
def _resize_preprocessor_impl(imgs, height, width, interpolation_mode,
                              single_buffer_weights, max_planes_per_block):
    n, c, in_h, in_w = imgs.shape
    out_h, out_w = int(height), int(width)
    nc = n * c

    # bf16 MXU operands for bf16 inputs; f32 accumulation is kept in the dots.
    compute_dtype = jnp.bfloat16 if imgs.dtype == jnp.bfloat16 else jnp.float32

    if interpolation_mode == "bilinear":
        a_h = _bilinear_weight_matrix(out_h, in_h)
        a_w = _bilinear_weight_matrix(out_w, in_w)
    elif interpolation_mode in ("nearest", "nearest-exact"):
        exact = interpolation_mode == "nearest-exact"
        a_h = _nearest_weight_matrix(out_h, in_h, exact)
        a_w = _nearest_weight_matrix(out_w, in_w, exact)
    else:
        # TODO(synk): 'bicubic' / 'area' interpolation matrices not implemented.
        raise NotImplementedError(interpolation_mode)

    a_h = a_h.astype(compute_dtype)         # (out_H, in_H)
    a_w_t = a_w.T.astype(compute_dtype)     # (in_W, out_W)

    # Static contraction-order choice (per-plane MAC count).
    cost_w_first = in_h * out_w * (in_w + out_h)
    cost_h_first = out_h * in_w * (in_h + out_w)
    w_first = cost_w_first <= cost_h_first
    tmp_shape = (in_h, out_w) if w_first else (out_h, in_w)

    # ---- generation-aware plane batching (TB planes per grid step) --------
    vmem_cap = _tpu_vmem_capacity_bytes()        # 128 MiB v5e/v6e, 64 MiB v7x
    two_core_proxy = vmem_cap <= 80 * 2**20      # v7x: 2 TensorCores / chip
    budget = min(max(vmem_cap // 3, 16 * 2**20), 48 * 2**20)

    plane_bytes = 2 * (_vmem_tile_bytes(in_h, in_w, imgs.dtype)        # dbl-buf in
                       + _vmem_tile_bytes(out_h, out_w, imgs.dtype))   # dbl-buf out
    weight_bufs = 1 if single_buffer_weights else 2
    fixed_bytes = (weight_bufs * (_vmem_tile_bytes(out_h, in_h, compute_dtype)
                                  + _vmem_tile_bytes(in_w, out_w, compute_dtype))
                   + _vmem_tile_bytes(tmp_shape[0], tmp_shape[1], compute_dtype))

    tb = max(1, (budget - fixed_bytes) // plane_bytes)
    tb = int(min(tb, nc))
    if two_core_proxy and nc >= 2:
        tb = min(tb, (nc + 1) // 2)              # >= 2 grid steps for the 2 TCs
    if max_planes_per_block is not None:
        tb = max(1, min(tb, int(max_planes_per_block)))
    num_blocks = (nc + tb - 1) // tb             # ragged last block: Pallas handles it

    vmem_est = fixed_bytes + tb * plane_bytes
    vmem_limit = int(min(max(vmem_est + 8 * 2**20, 32 * 2**20),
                         (vmem_cap * 7) // 8))

    weight_kwargs = (dict(pipeline_mode=pl.Buffered(1))
                     if single_buffer_weights else {})

    x = imgs.reshape(nc, in_h, in_w)             # leading-dim merge: free reshape

    kernel = functools.partial(_resize_kernel, tb=tb, w_first=w_first)
    resized = pl.pallas_call(
        kernel,
        out_shape=jax.ShapeDtypeStruct((nc, out_h, out_w), imgs.dtype),
        grid_spec=pltpu.PrefetchScalarGridSpec(
            num_scalar_prefetch=0,
            grid=(num_blocks,),
            in_specs=[
                pl.BlockSpec((out_h, in_h), lambda i: (0, 0), **weight_kwargs),
                pl.BlockSpec((in_w, out_w), lambda i: (0, 0), **weight_kwargs),
                pl.BlockSpec((tb, in_h, in_w), lambda i: (i, 0, 0)),
            ],
            out_specs=pl.BlockSpec((tb, out_h, out_w), lambda i: (i, 0, 0)),
            scratch_shapes=[pltpu.VMEM(tmp_shape, compute_dtype)],
        ),
        compiler_params=pltpu.CompilerParams(
            dimension_semantics=("parallel",),
            vmem_limit_bytes=vmem_limit),
    )(a_h, a_w_t, x)

    resized = resized.reshape(n, c, out_h, out_w)

    # original_sizes: imgs[0].new_zeros((N, 2)) filled with (H, W) -> imgs.dtype.
    # (Values not exactly representable in low-precision dtypes round, as in torch.)
    original_sizes = jnp.broadcast_to(
        jnp.array([in_h, in_w], dtype=imgs.dtype), (n, 2))
    return resized, original_sizes


def resize_preprocessor(imgs: jnp.ndarray,
                        height: int,
                        width: int,
                        interpolation_mode: str = "bilinear",
                        *,
                        max_planes_per_block=None):
    """Pallas TPU implementation of ResizePreProcessor.forward (batched NCHW)."""
    return _resize_preprocessor_impl(
        imgs,
        height=int(height),
        width=int(width),
        interpolation_mode=interpolation_mode,
        single_buffer_weights=_single_buffer_weights_supported(),
        max_planes_per_block=max_planes_per_block)


# ---------------------------------------------------------------------------
# Pure-JAX reference (same interpolation math) for sanity checks
# ---------------------------------------------------------------------------
def _reference_resize(imgs, out_h, out_w, mode="bilinear"):
    n, c, in_h, in_w = imgs.shape
    if mode == "bilinear":
        a_h = _bilinear_weight_matrix(out_h, in_h)
        a_w = _bilinear_weight_matrix(out_w, in_w)
    else:
        exact = mode == "nearest-exact"
        a_h = _nearest_weight_matrix(out_h, in_h, exact)
        a_w = _nearest_weight_matrix(out_w, in_w, exact)
    return jnp.einsum("oh,nchw,pw->ncop", a_h, imgs.astype(jnp.float32), a_w,
                      precision=jax.lax.Precision.HIGHEST).astype(imgs.dtype)


if __name__ == "__main__":
    key = jax.random.PRNGKey(0)

    # Case 1: bilinear upsample 16x16 -> 32x32 (small shapes).
    N, C, H, W = 2, 4, 16, 16
    OH, OW = 32, 32
    x = jax.random.normal(key, (N, C, H, W), dtype=jnp.float32)
    resized, sizes = resize_preprocessor(x, OH, OW, "bilinear")
    jax.block_until_ready((resized, sizes))
    assert resized.shape == (N, C, OH, OW)
    assert sizes.shape == (N, 2) and sizes.dtype == x.dtype
    assert bool(jnp.allclose(
        sizes, jnp.broadcast_to(jnp.array([H, W], dtype=x.dtype), (N, 2))))
    ref = _reference_resize(x, OH, OW, "bilinear")
    assert float(jnp.max(jnp.abs(resized - ref))) < 1e-4
    # Independent oracle: jax.image.resize half-pixel linear == torch bilinear
    # (align_corners=False, no antialias).
    oracle = jax.image.resize(x, (N, C, OH, OW), method="bilinear",
                              antialias=False)
    assert float(jnp.max(jnp.abs(resized - oracle))) < 5e-4

    # Case 2: asymmetric resize with a large W downsample (w-first path).
    H2, W2, OH2, OW2 = 8, 512, 256, 16
    x2 = jax.random.normal(jax.random.PRNGKey(0), (2, 4, H2, W2),
                           dtype=jnp.float32)
    r2, _ = resize_preprocessor(x2, OH2, OW2, "bilinear")
    jax.block_until_ready(r2)
    assert r2.shape == (2, 4, OH2, OW2)
    assert float(jnp.max(jnp.abs(
        r2 - _reference_resize(x2, OH2, OW2, "bilinear")))) < 1e-4
    oracle2 = jax.image.resize(x2, (2, 4, OH2, OW2), method="bilinear",
                               antialias=False)
    assert float(jnp.max(jnp.abs(r2 - oracle2))) < 5e-4

    # Case 3: nearest and nearest-exact modes.
    r3, _ = resize_preprocessor(x, OH, OW, "nearest")
    jax.block_until_ready(r3)
    assert float(jnp.max(jnp.abs(
        r3 - _reference_resize(x, OH, OW, "nearest")))) < 1e-5
    r3e, _ = resize_preprocessor(x, OH, OW, "nearest-exact")
    jax.block_until_ready(r3e)
    assert float(jnp.max(jnp.abs(
        r3e - _reference_resize(x, OH, OW, "nearest-exact")))) < 1e-5

    # Case 4: ragged plane count (N*C not divisible by the plane batch):
    # exercises the partial last grid block (no wrapper-side zero padding).
    x4 = jax.random.normal(jax.random.PRNGKey(1), (3, 2, 16, 16),
                           dtype=jnp.float32)
    r4, _ = resize_preprocessor(x4, OH, OW, "bilinear", max_planes_per_block=4)
    jax.block_until_ready(r4)
    assert r4.shape == (3, 2, OH, OW)
    assert float(jnp.max(jnp.abs(
        r4 - _reference_resize(x4, OH, OW, "bilinear")))) < 1e-4

    # Case 5: bf16 inputs (bf16 MXU operands, bf16 scratch, f32 accumulation).
    xb = x.astype(jnp.bfloat16)
    rb, sb = resize_preprocessor(xb, OH, OW, "bilinear")
    jax.block_until_ready(rb)
    assert rb.dtype == jnp.bfloat16 and sb.dtype == jnp.bfloat16
    refb = _reference_resize(xb, OH, OW, "bilinear")
    assert float(jnp.max(jnp.abs(
        rb.astype(jnp.float32) - refb.astype(jnp.float32)))) < 5e-2

    print("KERNEL_OK")
</pallas_src>

<mosaic_0001>
module attributes {stable_mosaic.version = 11 : i64} {
  func.func @_copy(%arg0: i32, %arg1: memref<8x128xf32, #tpu.memory_space<vmem>>, %arg2: memref<8x128xf32, #tpu.memory_space<vmem>>, %arg3: memref<8x128xf32, #tpu.memory_space<vmem>>) attributes {dimension_semantics = [#tpu.dimension_semantics<arbitrary>], iteration_bounds = array<i64: 2>, scalar_prefetch = 0 : i64, scratch_operands = 1 : i64, tpu.core_type = #tpu.core_type<tc>, window_params = [{pipeline_mode = #tpu.pipeline_mode<synchronous>, transform_indices = @transform_0, window_bounds = array<i64: 8, 128>}, {transform_indices = @transform_1, window_bounds = array<i64: 8, 128>}]} {
    %c0 = arith.constant 0 : index
    %c0_0 = arith.constant 0 : index
    %0 = vector.load %arg1[%c0, %c0_0] : memref<8x128xf32, #tpu.memory_space<vmem>>, vector<8x128xf32>
    %c0_1 = arith.constant 0 : index
    %c0_2 = arith.constant 0 : index
    %1 = vector.load %arg3[%c0_1, %c0_2] : memref<8x128xf32, #tpu.memory_space<vmem>>, vector<8x128xf32>
    tpu.vector_store %arg3[%c0_1, %c0_2], %0 {strides = array<i32>} : memref<8x128xf32, #tpu.memory_space<vmem>>, vector<8x128xf32>,
    %c0_3 = arith.constant 0 : index
    %c0_4 = arith.constant 0 : index
    %2 = vector.load %arg3[%c0_3, %c0_4] : memref<8x128xf32, #tpu.memory_space<vmem>>, vector<8x128xf32>
    %c0_5 = arith.constant 0 : index
    %c0_6 = arith.constant 0 : index
    %3 = vector.load %arg2[%c0_5, %c0_6] : memref<8x128xf32, #tpu.memory_space<vmem>>, vector<8x128xf32>
    tpu.vector_store %arg2[%c0_5, %c0_6], %2 {strides = array<i32>} : memref<8x128xf32, #tpu.memory_space<vmem>>, vector<8x128xf32>,
    return
  }
  func.func @transform_0(%arg0: i32) -> (i32, i32) {
    %c0_i32 = arith.constant 0 : i32
    %c0_i32_0 = arith.constant 0 : i32
    %c0_i32_1 = arith.constant 0 : i32
    return %c0_i32, %c0_i32_0 : i32, i32
  }
  func.func @transform_1(%arg0: i32) -> (i32, i32) {
    %c0_i32 = arith.constant 0 : i32
    %c0_i32_0 = arith.constant 0 : i32
    return %arg0, %c0_i32 : i32, i32
  }
}

module attributes {stable_mosaic.version = 11 : i64} {
  func.func @_resize_kernel(%arg0: i32, %arg1: memref<32x16xf32, #tpu.memory_space<vmem>>, %arg2: memref<16x32xf32, #tpu.memory_space<vmem>>, %arg3: memref<4x16x16xf32, #tpu.memory_space<vmem>>, %arg4: memref<4x32x32xf32, #tpu.memory_space<vmem>>, %arg5: memref<16x32xf32, #tpu.memory_space<vmem>>) attributes {dimension_semantics = [#tpu.dimension_semantics<parallel>], iteration_bounds = array<i64: 2>, scalar_prefetch = 0 : i64, scratch_operands = 1 : i64, tpu.core_type = #tpu.core_type<tc>, window_params = [{pipeline_mode = #tpu.pipeline_mode<synchronous>, transform_indices = @transform_0, window_bounds = array<i64: 32, 16>}, {pipeline_mode = #tpu.pipeline_mode<synchronous>, transform_indices = @transform_1, window_bounds = array<i64: 16, 32>}, {transform_indices = @transform_2, window_bounds = array<i64: 4, 16, 16>}, {transform_indices = @transform_3, window_bounds = array<i64: 4, 32, 32>}]} {
    %c0_i32 = arith.constant 0 : i32
    %c4_i32 = arith.constant 4 : i32
    %0 = arith.addi %c0_i32, %c4_i32 : i32
    %c1_i32 = arith.constant 1 : i32
    scf.for %arg6 = %c0_i32 to %0 step %c1_i32  : i32 {
      %1 = arith.index_cast %arg6 : i32 to index
      %c0 = arith.constant 0 : index
      %c0_1 = arith.constant 0 : index
      %2 = vector.load %arg3[%1, %c0, %c0_1] : memref<4x16x16xf32, #tpu.memory_space<vmem>>, vector<1x16x16xf32>
      %3 = vector.shape_cast %2 : vector<1x16x16xf32> to vector<16x16xf32>
      %c0_2 = arith.constant 0 : index
      %c0_3 = arith.constant 0 : index
      %4 = vector.load %arg2[%c0_2, %c0_3] : memref<16x32xf32, #tpu.memory_space<vmem>>, vector<16x32xf32>
      %cst = arith.constant dense<0.000000e+00> : vector<16x32xf32>
      %5 = tpu.matmul %3, %4, %cst {dimension_numbers = #tpu.dot_dimension_numbers<[1], [0], [0], [1], [0, 0, 1, 1], [], []>} : vector<16x16xf32>, vector<16x32xf32>, vector<16x32xf32> -> vector<16x32xf32>
      %c0_4 = arith.constant 0 : index
      %c0_5 = arith.constant 0 : index
      %6 = vector.load %arg5[%c0_4, %c0_5] : memref<16x32xf32, #tpu.memory_space<vmem>>, vector<16x32xf32>
      tpu.vector_store %arg5[%c0_4, %c0_5], %5 {strides = array<i32>} : memref<16x32xf32, #tpu.memory_space<vmem>>, vector<16x32xf32>,
      %c0_6 = arith.constant 0 : index
      %c0_7 = arith.constant 0 : index
      %7 = vector.load %arg1[%c0_6, %c0_7] : memref<32x16xf32, #tpu.memory_space<vmem>>, vector<32x16xf32>
      %c0_8 = arith.constant 0 : index
      %c0_9 = arith.constant 0 : index
      %8 = vector.load %arg5[%c0_8, %c0_9] : memref<16x32xf32, #tpu.memory_space<vmem>>, vector<16x32xf32>
      %cst_10 = arith.constant dense<0.000000e+00> : vector<32x32xf32>
      %9 = tpu.matmul %7, %8, %cst_10 {dimension_numbers = #tpu.dot_dimension_numbers<[1], [0], [0], [1], [0, 0, 1, 1], [], []>} : vector<32x16xf32>, vector<16x32xf32>, vector<32x32xf32> -> vector<32x32xf32>
      %10 = arith.index_cast %arg6 : i32 to index
      %c0_11 = arith.constant 0 : index
      %c0_12 = arith.constant 0 : index
      %11 = vector.load %arg4[%10, %c0_11, %c0_12] : memref<4x32x32xf32, #tpu.memory_space<vmem>>, vector<1x32x32xf32>
      %12 = vector.shape_cast %11 : vector<1x32x32xf32> to vector<32x32xf32>
      %13 = vector.shape_cast %9 : vector<32x32xf32> to vector<1x32x32xf32>
      tpu.vector_store %arg4[%10, %c0_11, %c0_12], %13 {strides = array<i32>} : memref<4x32x32xf32, #tpu.memory_space<vmem>>, vector<1x32x32xf32>,
    }
    %c4_i32_0 = arith.constant 4 : i32
    return
  }
  func.func @transform_0(%arg0: i32) -> (i32, i32) {
    %c0_i32 = arith.constant 0 : i32
    %c0_i32_0 = arith.constant 0 : i32
    %c0_i32_1 = arith.constant 0 : i32
    return %c0_i32, %c0_i32_0 : i32, i32
  }
  func.func @transform_1(%arg0: i32) -> (i32, i32) {
    %c0_i32 = arith.constant 0 : i32
    %c0_i32_0 = arith.constant 0 : i32
    %c0_i32_1 = arith.constant 0 : i32
    return %c0_i32, %c0_i32_0 : i32, i32
  }
  func.func @transform_2(%arg0: i32) -> (i32, i32, i32) {
    %c0_i32 = arith.constant 0 : i32
    %c0_i32_0 = arith.constant 0 : i32
    %c0_i32_1 = arith.constant 0 : i32
    return %arg0, %c0_i32, %c0_i32_0 : i32, i32, i32
  }
  func.func @transform_3(%arg0: i32) -> (i32, i32, i32) {
    %c0_i32 = arith.constant 0 : i32
    %c0_i32_0 = arith.constant 0 : i32
    %c0_i32_1 = arith.constant 0 : i32
    return %arg0, %c0_i32, %c0_i32_0 : i32, i32, i32
  }
}

</mosaic_0001>

<llo_original>
// kernel: tpu_custom_call.1
$region0: #{tpu_custom_call.1}
  #allocation0 [shape = 'u32[]', space=smem, size = 0x4, offset = 0x4, fixed_abs, tag = 'smem constant byte address 0x4 - core index']
  #allocation1 [shape = 'u32[144,128]{1,0:T(1,128)}', space=vmem, size = 0x12000, scoped, tag = 'internal scratch']
  #allocation2 [shape = 'f32[8,128]{1,0:T(8,128)}', space=vmem, size = 0x1000, scoped, tag = 'scratch operand']
  %s0 = inlined_call_operand.hbm [shape: f32[8,128], index: 0, kind: input, shape index: {}]
  %s1 = inlined_call_operand.hbm [shape: f32[16,128], index: 1, kind: output, shape index: {}]
  %s2 = sld [smem:[#allocation0]]
  $region41: #{tpu_custom_call.1} parent=0
    _
  %s4 = ssub.s32 1, %s2
  %s5 = scalar_select 0, %s4, %s2
  $region1: #{tpu_custom_call.1} parent=0
    #allocation3 [shape = 'u8[4096]{0}', space=vmem, size = 0x1000, scoped, tag = 'input window, operand 0, single buffered']
    #allocation4 [shape = 's32[2]{0}', space=sflag, size = 0x8, scoped, tag = 'scoped memory for tpu_custom_call.1']
    #allocation5 [shape = 's32[2]{0}', space=sflag, size = 0x8, scoped, tag = 'scoped memory for tpu_custom_call.1']
    #allocation6 [shape = 'u8[8192]{0}', space=vmem, size = 0x2000, scoped, tag = 'output window, operand 0']
    %6 = vsyncpa [#allocation4], 0
    %7 = vsyncpa [#allocation5], 0
    %s8 = scalar_lea.sflag [#allocation5], 1
    %9 = vsyncpa %s8, 0
    loop: start=0, step=1, limit=4
    $region2: #{tpu_custom_call.1} parent=1 // loop_pre_header
      _
    $region3: #{tpu_custom_call.1} parent=1 // loop_header
      %s11 = sphi 0, %s15
      %p12 = scmp.ge.s32.totalorder %s11, 4
      %s19 = sphi 0, %s19
      %s21 = sphi 0, %s19
      %s22 = sphi 0, %s21
      %s36 = sphi 0, %s22
      %s42 = sphi 0, %s44
      %s45 = sphi 0, %s42
      %s46 = sphi 0, %s45
      %s62 = sphi 0, %s46
    $region4: #{tpu_custom_call.1} parent=1 // loop_header_branch
      %14 = sbr.rel (%p12) target = $region8
    $region5: #{tpu_custom_call.1} parent=1 // loop_body
      %s16 = ssub.s32 %s11, 1
      %s17 = ssub.s32 %s11, 2
      %s18 = sadd.s32 %s11, 1
      %s20 = sadd.s32 %s19, 1
      %p23 = scmp.eq.s32.totalorder %s11, 1
      %p24 = scmp.ne.s32.totalorder %s19, %s21
      %p25 = scmp.eq.s32.totalorder %s11, 0
      %p26 = por %p24, %p25
      %p27 = scmp.ne.s32.totalorder %s19, %s21
      %p28 = scmp.eq.s32.totalorder %s16, 1
      %p29 = por %p27, %p28
      %p30 = scmp.ne.s32.totalorder %s21, %s22
      %p31 = scmp.eq.s32.totalorder %s16, 0
      %p32 = por %p30, %p31
      %p33 = scmp.ne.s32.totalorder %s21, %s22
      %p34 = scmp.eq.s32.totalorder %s17, 1
      %p35 = por %p33, %p34
      %p37 = scmp.ne.s32.totalorder %s22, %s36
      %p38 = scmp.eq.s32.totalorder %s17, 0
      %p39 = por %p37, %p38
      %s40 = ssub.s32 %s11, %s18
      %p41 = scmp.eq.s32.totalorder %s40, 0
      %s43 = sadd.s32 %s42, 1
      %s44 = scalar_select %p41, %s42, %s43
      %p47 = pneg %p41
      %p48 = scmp.eq.s32.totalorder %s11, 1
      %p49 = por %p47, %p48
      %p50 = scmp.ne.s32.totalorder %s42, %s45
      %p51 = scmp.eq.s32.totalorder %s11, 0
      %p52 = por %p50, %p51
      %p53 = scmp.ne.s32.totalorder %s42, %s45
      %p54 = scmp.eq.s32.totalorder %s16, 1
      %p55 = por %p53, %p54
      %p56 = scmp.ne.s32.totalorder %s45, %s46
      %p57 = scmp.eq.s32.totalorder %s16, 0
      %p58 = por %p56, %p57
      %p59 = scmp.ne.s32.totalorder %s45, %s46
      %p60 = scmp.eq.s32.totalorder %s17, 1
      %p61 = por %p59, %p60
      %p63 = scmp.ne.s32.totalorder %s46, %s62
      %p64 = scmp.eq.s32.totalorder %s17, 0
      %p65 = por %p63, %p64
      %p66 = scmp.le.s32.totalorder 1, %s11
      %p67 = scmp.lt.s32.totalorder %s11, 3
      %p68 = pnand %p66, %p67
      %p69 = pneg %p68
      // Predicated region
      $region9: #{tpu_custom_call.1} parent=5 // pred_check
        _
      $region10: #{tpu_custom_call.1} parent=5 // pred_check_branch
        %71 = sbr.rel (%p68) target = $region12
      $region11: #{tpu_custom_call.1} parent=5 // pred_region
        %s72 = ssub.s32 %s11, 1
        // Predicated region
        $region13: #{tpu_custom_call.1} parent=11 // pred_check
          %p73 = pneg %p32
        $region14: #{tpu_custom_call.1} parent=11 // pred_check_branch
          %75 = sbr.rel (%p73) target = $region16
        $region15: #{tpu_custom_call.1} parent=11 // pred_region
          %s77 = ssub.s32 128, 128
          %78 = vsyncadd [#allocation4], %s77
          %s80 = sshll.u32 [#allocation3], 4
          %s81 = int_to_ptr.vmem [resolvable:$true] %s80
          %83 = dma.hbm_to_vmem [thread:$0]  %s0, 128, %s81, [#allocation4]
        $region16: #{tpu_custom_call.1} parent=11 // pred_fallthru
          _
      $region12: #{tpu_custom_call.1} parent=5 // pred_fallthru
        _
      %p84 = scmp.lt.s32.totalorder %s11, 2
      // Predicated region
      $region17: #{tpu_custom_call.1} parent=5 // pred_check
        %p85 = pneg %p84
      $region18: #{tpu_custom_call.1} parent=5 // pred_check_branch
        %87 = sbr.rel (%p85) target = $region20
      $region19: #{tpu_custom_call.1} parent=5 // pred_region
        _
      $region20: #{tpu_custom_call.1} parent=5 // pred_fallthru
        _
      %p88 = scmp.le.s32.totalorder 1, %s11
      %p89 = scmp.lt.s32.totalorder %s11, 3
      %p90 = pnand %p88, %p89
      %p91 = pneg %p90
      // Predicated region
      $region21: #{tpu_custom_call.1} parent=5 // pred_check
        _
      $region22: #{tpu_custom_call.1} parent=5 // pred_check_branch
        %93 = sbr.rel (%p90) target = $region24
      $region23: #{tpu_custom_call.1} parent=5 // pred_region
        %s94 = ssub.s32 %s11, 1
        // Predicated region
        $region25: #{tpu_custom_call.1} parent=23 // pred_check
          %p95 = pneg %p32
        $region26: #{tpu_custom_call.1} parent=23 // pred_check_branch
          %97 = sbr.rel (%p95) target = $region28
        $region27: #{tpu_custom_call.1} parent=23 // pred_region
          %98 = dma.done [#allocation4], 128
        $region28: #{tpu_custom_call.1} parent=23 // pred_fallthru
          _
        %p99 = pneg %p32
        %p100 = pneg %p29
        %p101 = pneg %p58
        %p102 = pneg %p55
        %s103 = sand.u32 %s45, 1
        %s104 = scalar_lea.sflag [#allocation5], %s103
        %s105 = sand.u32 %s45, 1
        %s106 = smul.addr %s105, 8
        %s107 = scalar_lea.vmem [#allocation6], %s106
        %v108 = vld [vmem:[#allocation3] sm:$0xff]
        %109 = vst [vmem:[#allocation2] sm:$0xff] %v108
        %v110 = vld [vmem:[#allocation2] sm:$0xff]
        %111 = vst [vmem:[%s107] sm:$0xff] %v110
        %s112 = sand.u32 %s45, 1
        %s113 = scalar_lea.sflag [#allocation5], %s112
        %s114 = sand.u32 %s45, 1
        %s115 = smul.addr %s114, 8
        %s116 = scalar_lea.vmem [#allocation6], %s115
        // Predicated region
        $region29: #{tpu_custom_call.1} parent=23 // pred_check
          %p117 = pneg %p55
        $region30: #{tpu_custom_call.1} parent=23 // pred_check_branch
          %119 = sbr.rel (%p117) target = $region32
        $region31: #{tpu_custom_call.1} parent=23 // pred_region
          %s121 = ssub.s32 128, 128
          %122 = vsyncadd %s113, %s121
          %s123 = smul.addr %s16, 128
          %s124 = scalar_lea.hbm %s1, %s123
          %s126 = sshll.u32 %s116, 4
          %s127 = int_to_ptr.vmem [resolvable:$true] %s126
          %129 = dma.vmem_to_hbm [thread:$0]  %s127, 128, %s124, %s113
        $region32: #{tpu_custom_call.1} parent=23 // pred_fallthru
          _
      $region24: #{tpu_custom_call.1} parent=5 // pred_fallthru
        _
      %p130 = scmp.le.s32.totalorder 2, %s11
      // Predicated region
      $region33: #{tpu_custom_call.1} parent=5 // pred_check
        %p131 = pneg %p130
      $region34: #{tpu_custom_call.1} parent=5 // pred_check_branch
        %133 = sbr.rel (%p131) target = $region36
      $region35: #{tpu_custom_call.1} parent=5 // pred_region
        %s134 = ssub.s32 %s11, 2
        // Predicated region
        $region37: #{tpu_custom_call.1} parent=35 // pred_check
          %p135 = pneg %p61
        $region38: #{tpu_custom_call.1} parent=35 // pred_check_branch
          %137 = sbr.rel (%p135) target = $region40
        $region39: #{tpu_custom_call.1} parent=35 // pred_region
          %s138 = sand.u32 %s46, 1
          %s139 = scalar_lea.sflag [#allocation5], %s138
          %s140 = sand.u32 %s46, 1
          %s141 = smul.addr %s140, 8
          %s142 = scalar_lea.vmem [#allocation6], %s141
          %143 = dma.done %s139, 128
        $region40: #{tpu_custom_call.1} parent=35 // pred_fallthru
          _
      $region36: #{tpu_custom_call.1} parent=5 // pred_fallthru
        _
    $region6: #{tpu_custom_call.1} parent=1 // loop_footer
      %s15 = sadd.s32 1, %s11
    $region7: #{tpu_custom_call.1} parent=1 // loop_footer_branch
      %10 = sbr.rel target = $region3
    $region8: #{tpu_custom_call.1} parent=1 // loop_exit
      _
    %144 = vsyncpa [#allocation4], 1
    %s145 = scalar_lea.sflag [#allocation4], 1
    %146 = vsyncpa %s145, 1
    %147 = vsyncpa [#allocation5], 1
    %s148 = scalar_lea.sflag [#allocation5], 1
    %149 = vsyncpa %s148, 1

// kernel: _resize_preprocessor_impl.1
$region0: #{_resize_preprocessor_impl.1}
  #allocation0 [shape = 'u32[]', space=smem, size = 0x4, offset = 0x4, fixed_abs, tag = 'smem constant byte address 0x4 - core index']
  #allocation1 [shape = 'u32[144,128]{1,0:T(1,128)}', space=vmem, size = 0x12000, scoped, tag = 'internal scratch']
  #allocation2 [shape = 'f32[16,32]{1,0:T(8,128)}', space=vmem, size = 0x2000, scoped, tag = 'scratch operand']
  %s0 = inlined_call_operand.vmem [shape: f32[32,16], index: 0, kind: input, shape index: {}]
  %s1 = inlined_call_operand.vmem [shape: f32[16,32], index: 1, kind: input, shape index: {}]
  %s2 = inlined_call_operand.hbm [shape: f32[8,16,16], index: 2, kind: input, shape index: {}]
  %s3 = inlined_call_operand.hbm [shape: f32[8,32,32], index: 3, kind: output, shape index: {}]
  %s4 = sld [smem:[#allocation0]]
  $region56: #{_resize_preprocessor_impl.1} parent=0
    _
  %s6 = ssub.s32 1, %s4
  %s7 = scalar_select 0, %s6, %s4
  $region1: #{_resize_preprocessor_impl.1} parent=0
    #allocation3 [shape = 'u8[65536]{0}', space=vmem, size = 0x10000, scoped, tag = 'input window, operand 2']
    #allocation4 [shape = 's32[2]{0}', space=sflag, size = 0x8, scoped, tag = 'scoped memory for _resize_preprocessor_impl.1']
    #allocation5 [shape = 's32[2]{0}', space=sflag, size = 0x8, scoped, tag = 'scoped memory for _resize_preprocessor_impl.1']
    #allocation6 [shape = 'u8[131072]{0}', space=vmem, size = 0x20000, scoped, tag = 'output window, operand 0']
    %8 = vsyncpa [#allocation4], 0
    %s9 = scalar_lea.sflag [#allocation4], 1
    %10 = vsyncpa %s9, 0
    %11 = vsyncpa [#allocation5], 0
    %s12 = scalar_lea.sflag [#allocation5], 1
    %13 = vsyncpa %s12, 0
    loop: start=0, step=1, limit=4
    $region2: #{_resize_preprocessor_impl.1} parent=1 // loop_pre_header
      _
    $region3: #{_resize_preprocessor_impl.1} parent=1 // loop_header
      %s15 = sphi 0, %s19
      %p16 = scmp.ge.s32.totalorder %s15, 4
      %s23 = sphi 0, %s23
      %s25 = sphi 0, %s23
      %s26 = sphi 0, %s25
      %s40 = sphi 0, %s26
      %s44 = sphi 0, %s44
      %s46 = sphi 0, %s44
      %s47 = sphi 0, %s46
      %s61 = sphi 0, %s47
      %s67 = sphi 0, %s69
      %s70 = sphi 0, %s67
      %s71 = sphi 0, %s70
      %s87 = sphi 0, %s71
      %s93 = sphi 0, %s95
      %s96 = sphi 0, %s93
      %s97 = sphi 0, %s96
      %s113 = sphi 0, %s97
    $region4: #{_resize_preprocessor_impl.1} parent=1 // loop_header_branch
      %18 = sbr.rel (%p16) target = $region8
    $region5: #{_resize_preprocessor_impl.1} parent=1 // loop_body
      %s20 = ssub.s32 %s15, 1
      %s21 = ssub.s32 %s15, 2
      %s22 = sadd.s32 %s15, 1
      %s24 = sadd.s32 %s23, 1
      %p27 = scmp.eq.s32.totalorder %s15, 1
      %p28 = scmp.ne.s32.totalorder %s23, %s25
      %p29 = scmp.eq.s32.totalorder %s15, 0
      %p30 = por %p28, %p29
      %p31 = scmp.ne.s32.totalorder %s23, %s25
      %p32 = scmp.eq.s32.totalorder %s20, 1
      %p33 = por %p31, %p32
      %p34 = scmp.ne.s32.totalorder %s25, %s26
      %p35 = scmp.eq.s32.totalorder %s20, 0
      %p36 = por %p34, %p35
      %p37 = scmp.ne.s32.totalorder %s25, %s26
      %p38 = scmp.eq.s32.totalorder %s21, 1
      %p39 = por %p37, %p38
      %p41 = scmp.ne.s32.totalorder %s26, %s40
      %p42 = scmp.eq.s32.totalorder %s21, 0
      %p43 = por %p41, %p42
      %s45 = sadd.s32 %s44, 1
      %p48 = scmp.eq.s32.totalorder %s15, 1
      %p49 = scmp.ne.s32.totalorder %s44, %s46
      %p50 = scmp.eq.s32.totalorder %s15, 0
      %p51 = por %p49, %p50
      %p52 = scmp.ne.s32.totalorder %s44, %s46
      %p53 = scmp.eq.s32.totalorder %s20, 1
      %p54 = por %p52, %p53
      %p55 = scmp.ne.s32.totalorder %s46, %s47
      %p56 = scmp.eq.s32.totalorder %s20, 0
      %p57 = por %p55, %p56
      %p58 = scmp.ne.s32.totalorder %s46, %s47
      %p59 = scmp.eq.s32.totalorder %s21, 1
      %p60 = por %p58, %p59
      %p62 = scmp.ne.s32.totalorder %s47, %s61
      %p63 = scmp.eq.s32.totalorder %s21, 0
      %p64 = por %p62, %p63
      %s65 = ssub.s32 %s15, %s22
      %p66 = scmp.eq.s32.totalorder %s65, 0
      %s68 = sadd.s32 %s67, 1
      %s69 = scalar_select %p66, %s67, %s68
      %p72 = pneg %p66
      %p73 = scmp.eq.s32.totalorder %s15, 1
      %p74 = por %p72, %p73
      %p75 = scmp.ne.s32.totalorder %s67, %s70
      %p76 = scmp.eq.s32.totalorder %s15, 0
      %p77 = por %p75, %p76
      %p78 = scmp.ne.s32.totalorder %s67, %s70
      %p79 = scmp.eq.s32.totalorder %s20, 1
      %p80 = por %p78, %p79
      %p81 = scmp.ne.s32.totalorder %s70, %s71
      %p82 = scmp.eq.s32.totalorder %s20, 0
      %p83 = por %p81, %p82
      %p84 = scmp.ne.s32.totalorder %s70, %s71
      %p85 = scmp.eq.s32.totalorder %s21, 1
      %p86 = por %p84, %p85
      %p88 = scmp.ne.s32.totalorder %s71, %s87
      %p89 = scmp.eq.s32.totalorder %s21, 0
      %p90 = por %p88, %p89
      %s91 = ssub.s32 %s15, %s22
      %p92 = scmp.eq.s32.totalorder %s91, 0
      %s94 = sadd.s32 %s93, 1
      %s95 = scalar_select %p92, %s93, %s94
      %p98 = pneg %p92
      %p99 = scmp.eq.s32.totalorder %s15, 1
      %p100 = por %p98, %p99
      %p101 = scmp.ne.s32.totalorder %s93, %s96
      %p102 = scmp.eq.s32.totalorder %s15, 0
      %p103 = por %p101, %p102
      %p104 = scmp.ne.s32.totalorder %s93, %s96
      %p105 = scmp.eq.s32.totalorder %s20, 1
      %p106 = por %p104, %p105
      %p107 = scmp.ne.s32.totalorder %s96, %s97
      %p108 = scmp.eq.s32.totalorder %s20, 0
      %p109 = por %p107, %p108
      %p110 = scmp.ne.s32.totalorder %s96, %s97
      %p111 = scmp.eq.s32.totalorder %s21, 1
      %p112 = por %p110, %p111
      %p114 = scmp.ne.s32.totalorder %s97, %s113
      %p115 = scmp.eq.s32.totalorder %s21, 0
      %p116 = por %p114, %p115
      %p117 = scmp.le.s32.totalorder 1, %s15
      %p118 = scmp.lt.s32.totalorder %s15, 3
      %p119 = pnand %p117, %p118
      %p120 = pneg %p119
      // Predicated region
      $region9: #{_resize_preprocessor_impl.1} parent=5 // pred_check
        _
      $region10: #{_resize_preprocessor_impl.1} parent=5 // pred_check_branch
        %122 = sbr.rel (%p119) target = $region12
      $region11: #{_resize_preprocessor_impl.1} parent=5 // pred_region
        %s123 = ssub.s32 %s15, 1
        // Predicated region
        $region13: #{_resize_preprocessor_impl.1} parent=11 // pred_check
          %p124 = pneg %p36
        $region14: #{_resize_preprocessor_impl.1} parent=11 // pred_check_branch
          %126 = sbr.rel (%p124) target = $region16
        $region15: #{_resize_preprocessor_impl.1} parent=11 // pred_region
          _
        $region16: #{_resize_preprocessor_impl.1} parent=11 // pred_fallthru
          _
        // Predicated region
        $region17: #{_resize_preprocessor_impl.1} parent=11 // pred_check
          %p127 = pneg %p57
        $region18: #{_resize_preprocessor_impl.1} parent=11 // pred_check_branch
          %129 = sbr.rel (%p127) target = $region20
        $region19: #{_resize_preprocessor_impl.1} parent=11 // pred_region
          _
        $region20: #{_resize_preprocessor_impl.1} parent=11 // pred_fallthru
          _
      $region12: #{_resize_preprocessor_impl.1} parent=5 // pred_fallthru
        _
      %p130 = scmp.lt.s32.totalorder %s15, 2
      // Predicated region
      $region21: #{_resize_preprocessor_impl.1} parent=5 // pred_check
        %p131 = pneg %p130
      $region22: #{_resize_preprocessor_impl.1} parent=5 // pred_check_branch
        %133 = sbr.rel (%p131) target = $region24
      $region23: #{_resize_preprocessor_impl.1} parent=5 // pred_region
        // Predicated region
        $region25: #{_resize_preprocessor_impl.1} parent=23 // pred_check
          %p134 = pneg %p77
        $region26: #{_resize_preprocessor_impl.1} parent=23 // pred_check_branch
          %136 = sbr.rel (%p134) target = $region28
        $region27: #{_resize_preprocessor_impl.1} parent=23 // pred_region
          %s137 = sand.u32 %s67, 1
          %s138 = scalar_lea.sflag [#allocation4], %s137
          %s139 = sand.u32 %s67, 1
          %s140 = smul.addr %s139, 64
          %s141 = scalar_lea.vmem [#allocation3], %s140
          %s142 = smul.u32 4, %s15
          %s144 = ssub.s32 1024, 1024
          %145 = vsyncadd %s138, %s144
          %s146 = smul.addr %s142, 2
          %s147 = smul.addr %s146, 128
          %s148 = scalar_lea.hbm %s2, %s147
          %s149 = sshll.u32 %s141, 4
          %s150 = int_to_ptr.vmem [resolvable:$true] %s149
          %155 = dma.hbm_to_vmem [thread:$0]  %s148, 1024, %s150, %s138, 128, 128, 8
        $region28: #{_resize_preprocessor_impl.1} parent=23 // pred_fallthru
          _
      $region24: #{_resize_preprocessor_impl.1} parent=5 // pred_fallthru
        _
      %p156 = scmp.le.s32.totalorder 1, %s15
      %p157 = scmp.lt.s32.totalorder %s15, 3
      %p158 = pnand %p156, %p157
      %p159 = pneg %p158
      // Predicated region
      $region29: #{_resize_preprocessor_impl.1} parent=5 // pred_check
        _
      $region30: #{_resize_preprocessor_impl.1} parent=5 // pred_check_branch
        %161 = sbr.rel (%p158) target = $region32
      $region31: #{_resize_preprocessor_impl.1} parent=5 // pred_region
        %s162 = ssub.s32 %s15, 1
        %s163 = sand.u32 %s70, 1
        %s164 = scalar_lea.sflag [#allocation4], %s163
        %s165 = sand.u32 %s70, 1
        %s166 = smul.addr %s165, 64
        %s167 = scalar_lea.vmem [#allocation3], %s166
        // Predicated region
        $region33: #{_resize_preprocessor_impl.1} parent=31 // pred_check
          %p168 = pneg %p83
        $region34: #{_resize_preprocessor_impl.1} parent=31 // pred_check_branch
          %170 = sbr.rel (%p168) target = $region36
        $region35: #{_resize_preprocessor_impl.1} parent=31 // pred_region
          %171 = dma.done %s164, 1024
        $region36: #{_resize_preprocessor_impl.1} parent=31 // pred_fallthru
          _
        %p172 = pneg %p36
        %p173 = pneg %p33
        %p174 = pneg %p57
        %p175 = pneg %p54
        %s176 = sand.u32 %s70, 1
        %s177 = scalar_lea.sflag [#allocation4], %s176
        %s178 = sand.u32 %s70, 1
        %s179 = smul.addr %s178, 64
        %s180 = scalar_lea.vmem [#allocation3], %s179
        %p181 = pneg %p83
        %p182 = pneg %p80
        %p183 = pneg %p109
        %p184 = pneg %p106
        %s185 = sand.u32 %s96, 1
        %s186 = scalar_lea.sflag [#allocation5], %s185
        %s187 = sand.u32 %s96, 1
        %s188 = smul.addr %s187, 128
        %s189 = scalar_lea.vmem [#allocation6], %s188
        %s190 = smul.u32 4, %s20
        %s191 = smul.u32 4, %s20
        loop: start=0, step=1, limit=4
        $region37: #{_resize_preprocessor_impl.1} parent=31 // loop_pre_header
          _
        $region38: #{_resize_preprocessor_impl.1} parent=31 // loop_header
          %s193 = sphi 0, %s197
          %p194 = scmp.ge.s32.totalorder %s193, 4
        $region39: #{_resize_preprocessor_impl.1} parent=31 // loop_header_branch
          %196 = sbr.rel (%p194) target = $region43
        $region40: #{_resize_preprocessor_impl.1} parent=31 // loop_body
          %s198 = smul.u32 %s193, 16
          %s199 = scalar_lea.vmem %s167, %s198 [#allocation3]
          %v200 = vld [vmem:[%s199] sm:$0xff]
          %v201 = vld [vmem:[%s199 + $0x8] sm:$0xff]
          %v202 = vld [vmem:[%s1] sm:$0xff]
          %v203 = vld [vmem:[%s1 + $0x8] sm:$0xff]
          %vm204 = vcmask 130048
          %v206 = vsel %vm204, %v200, 0
          %v209 = vsel %vm204, %v201, 0
          %211 = vmatprep.subr.mxu0 0.0
          %212 = vmatpush1.msra.mxu0 0.0
          %213 = vmatprep.subr.mxu0 0.0
          %214 = vmatpush1.msra.mxu0 0.0
          %215 = vmatprep.subr.mxu0 0.0
          %216 = vmatpush1.msra.mxu0 0.0
          %217 = vmatprep.subr.mxu0 0.0
          %218 = vmatpush1.msra.mxu0 0.0
          %219 = vmatprep.subr.mxu0 0.0
          %220 = vmatpush1.msra.mxu0 0.0
          %221 = vmatprep.subr.mxu0 0.0
          %222 = vmatpush1.msra.mxu0 0.0
          %223 = vmatprep.subr.mxu0 0.0
          %224 = vmatpush1.msra.mxu0 0.0
          %225 = vmatprep.subr.mxu0 0.0
          %226 = vmatpush1.msra.mxu0 0.0
          %227 = vmatprep.subr.mxu0 0.0
          %228 = vmatpush1.msra.mxu0 0.0
          %229 = vmatprep.subr.mxu0 0.0
          %230 = vmatpush1.msra.mxu0 0.0
          %231 = vmatprep.subr.mxu0 0.0
          %232 = vmatpush1.msra.mxu0 0.0
          %233 = vmatprep.subr.mxu0 0.0
          %234 = vmatpush1.msra.mxu0 0.0
          %235 = vmatprep.subr.mxu0 0.0
          %236 = vmatpush1.msra.mxu0 0.0
          %237 = vmatprep.subr.mxu0 0.0
          %238 = vmatpush1.msra.mxu0 0.0
          %239 = vmatprep.subr.mxu0 0.0
          %240 = vmatpush1.msra.mxu0 %v203
          %241 = vmatprep.subr.mxu0 0.0
          %242 = vmatpush1.msra.mxu0 %v202
          %243 = vmatprep.subr.mxu0 0.0
          %244 = vmatpush2.msra.mxu0 0.0
          %245 = vmatprep.subr.mxu0 0.0
          %246 = vmatpush2.msra.mxu0 0.0
          %247 = vmatprep.subr.mxu0 0.0
          %248 = vmatpush2.msra.mxu0 0.0
          %249 = vmatprep.subr.mxu0 0.0
          %250 = vmatpush2.msra.mxu0 0.0
          %251 = vmatprep.subr.mxu0 0.0
          %252 = vmatpush2.msra.mxu0 0.0
          %253 = vmatprep.subr.mxu0 0.0
          %254 = vmatpush2.msra.mxu0 0.0
          %255 = vmatprep.subr.mxu0 0.0
          %256 = vmatpush2.msra.mxu0 0.0
          %257 = vmatprep.subr.mxu0 0.0
          %258 = vmatpush2.msra.mxu0 0.0
          %259 = vmatprep.subr.mxu0 0.0
          %260 = vmatpush2.msra.mxu0 0.0
          %261 = vmatprep.subr.mxu0 0.0
          %262 = vmatpush2.msra.mxu0 0.0
          %263 = vmatprep.subr.mxu0 0.0
          %264 = vmatpush2.msra.mxu0 0.0
          %265 = vmatprep.subr.mxu0 0.0
          %266 = vmatpush2.msra.mxu0 0.0
          %267 = vmatprep.subr.mxu0 0.0
          %268 = vmatpush2.msra.mxu0 0.0
          %269 = vmatprep.subr.mxu0 0.0
          %270 = vmatpush2.msra.mxu0 0.0
          %271 = vmatprep.subr.mxu0 0.0
          %272 = vmatpush2.msra.mxu0 0.0
          %273 = vmatprep.subr.mxu0 0.0
          %274 = vmatpush2.msra.mxu0 0.0
          %275 = vmatprep.mubr.f32.mxu0 0.0
          %276 = vmatmul.mubr.f32.gmra.mxu0 %v206
          %v277 = vpop.f32.mrf.mxu0
          %v278 = vadd.f32 0.0, %v277
          %v279 = vpop.f32.mrf.mxu0
          %280 = vmatprep.mubr.f32.mxu0 0.0
          %281 = vmatmul.mubr.f32.gmra.mxu0 %v209
          %v282 = vpop.f32.mrf.mxu0
          %v283 = vadd.f32 0.0, %v282
          %v284 = vpop.f32.mrf.mxu0
          %285 = vdwg.mxu0
          %vm286 = vcmask 261120
          %287 = vst.msk [vmem:[#allocation2] sm:$0xff] %vm286, %v278
          %288 = vst.msk [vmem:[#allocation2 + $0x8] sm:$0xff] %vm286, %v283
          %v289 = vld [vmem:[%s0] sm:$0xff]
          %v290 = vld [vmem:[%s0 + $0x8] sm:$0xff]
          %v291 = vld [vmem:[%s0 + $0x10] sm:$0xff]
          %v292 = vld [vmem:[%s0 + $0x18] sm:$0xff]
          %v293 = vld [vmem:[#allocation2] sm:$0xff]
          %v294 = vld [vmem:[#allocation2 + $0x8] sm:$0xff]
          %v296 = vsel %vm204, %v289, 0
          %v299 = vsel %vm204, %v290, 0
          %v302 = vsel %vm204, %v291, 0
          %v305 = vsel %vm204, %v292, 0
          %307 = vmatprep.subr.mxu0 0.0
          %308 = vmatpush1.msra.mxu0 0.0
          %309 = vmatprep.subr.mxu0 0.0
          %310 = vmatpush1.msra.mxu0 0.0
          %311 = vmatprep.subr.mxu0 0.0
          %312 = vmatpush1.msra.mxu0 0.0
          %313 = vmatprep.subr.mxu0 0.0
          %314 = vmatpush1.msra.mxu0 0.0
          %315 = vmatprep.subr.mxu0 0.0
          %316 = vmatpush1.msra.mxu0 0.0
          %317 = vmatprep.subr.mxu0 0.0
          %318 = vmatpush1.msra.mxu0 0.0
          %319 = vmatprep.subr.mxu0 0.0
          %320 = vmatpush1.msra.mxu0 0.0
          %321 = vmatprep.subr.mxu0 0.0
          %322 = vmatpush1.msra.mxu0 0.0
          %323 = vmatprep.subr.mxu0 0.0
          %324 = vmatpush1.msra.mxu0 0.0
          %325 = vmatprep.subr.mxu0 0.0
          %326 = vmatpush1.msra.mxu0 0.0
          %327 = vmatprep.subr.mxu0 0.0
          %328 = vmatpush1.msra.mxu0 0.0
          %329 = vmatprep.subr.mxu0 0.0
          %330 = vmatpush1.msra.mxu0 0.0
          %331 = vmatprep.subr.mxu0 0.0
          %332 = vmatpush1.msra.mxu0 0.0
          %333 = vmatprep.subr.mxu0 0.0
          %334 = vmatpush1.msra.mxu0 0.0
          %335 = vmatprep.subr.mxu0 0.0
          %336 = vmatpush1.msra.mxu0 %v294
          %337 = vmatprep.subr.mxu0 0.0
          %338 = vmatpush1.msra.mxu0 %v293
          %339 = vmatprep.subr.mxu0 0.0
          %340 = vmatpush2.msra.mxu0 0.0
          %341 = vmatprep.subr.mxu0 0.0
          %342 = vmatpush2.msra.mxu0 0.0
          %343 = vmatprep.subr.mxu0 0.0
          %344 = vmatpush2.msra.mxu0 0.0
          %345 = vmatprep.subr.mxu0 0.0
          %346 = vmatpush2.msra.mxu0 0.0
          %347 = vmatprep.subr.mxu0 0.0
          %348 = vmatpush2.msra.mxu0 0.0
          %349 = vmatprep.subr.mxu0 0.0
          %350 = vmatpush2.msra.mxu0 0.0
          %351 = vmatprep.subr.mxu0 0.0
          %352 = vmatpush2.msra.mxu0 0.0
          %353 = vmatprep.subr.mxu0 0.0
          %354 = vmatpush2.msra.mxu0 0.0
          %355 = vmatprep.subr.mxu0 0.0
          %356 = vmatpush2.msra.mxu0 0.0
          %357 = vmatprep.subr.mxu0 0.0
          %358 = vmatpush2.msra.mxu0 0.0
          %359 = vmatprep.subr.mxu0 0.0
          %360 = vmatpush2.msra.mxu0 0.0
          %361 = vmatprep.subr.mxu0 0.0
          %362 = vmatpush2.msra.mxu0 0.0
          %363 = vmatprep.subr.mxu0 0.0
          %364 = vmatpush2.msra.mxu0 0.0
          %365 = vmatprep.subr.mxu0 0.0
          %366 = vmatpush2.msra.mxu0 0.0
          %367 = vmatprep.subr.mxu0 0.0
          %368 = vmatpush2.msra.mxu0 0.0
          %369 = vmatprep.subr.mxu0 0.0
          %370 = vmatpush2.msra.mxu0 0.0
          %371 = vmatprep.mubr.f32.mxu0 0.0
          %372 = vmatmul.mubr.f32.gmra.mxu0 %v296
          %v373 = vpop.f32.mrf.mxu0
          %v374 = vadd.f32 0.0, %v373
          %v375 = vpop.f32.mrf.mxu0
          %376 = vmatprep.mubr.f32.mxu0 0.0
          %377 = vmatmul.mubr.f32.gmra.mxu0 %v299
          %v378 = vpop.f32.mrf.mxu0
          %v379 = vadd.f32 0.0, %v378
          %v380 = vpop.f32.mrf.mxu0
          %381 = vmatprep.mubr.f32.mxu0 0.0
          %382 = vmatmul.mubr.f32.gmra.mxu0 %v302
          %v383 = vpop.f32.mrf.mxu0
          %v384 = vadd.f32 0.0, %v383
          %v385 = vpop.f32.mrf.mxu0
          %386 = vmatprep.mubr.f32.mxu0 0.0
          %387 = vmatmul.mubr.f32.gmra.mxu0 %v305
          %v388 = vpop.f32.mrf.mxu0
          %v389 = vadd.f32 0.0, %v388
          %v390 = vpop.f32.mrf.mxu0
          %391 = vdwg.mxu0
          %s392 = smul.u32 %s193, 32
          %s393 = scalar_lea.vmem %s189, %s392 [#allocation6]
          %394 = vst.msk [vmem:[%s393] sm:$0xff] %vm286, %v374
          %395 = vst.msk [vmem:[%s393 + $0x8] sm:$0xff] %vm286, %v379
          %396 = vst.msk [vmem:[%s393 + $0x10] sm:$0xff] %vm286, %v384
          %397 = vst.msk [vmem:[%s393 + $0x18] sm:$0xff] %vm286, %v389
        $region41: #{_resize_preprocessor_impl.1} parent=31 // loop_footer
          %s197 = sadd.s32 1, %s193
        $region42: #{_resize_preprocessor_impl.1} parent=31 // loop_footer_branch
          %192 = sbr.rel target = $region38
        $region43: #{_resize_preprocessor_impl.1} parent=31 // loop_exit
          _
        %s398 = sand.u32 %s96, 1
        %s399 = scalar_lea.sflag [#allocation5], %s398
        %s400 = sand.u32 %s96, 1
        %s401 = smul.addr %s400, 128
        %s402 = scalar_lea.vmem [#allocation6], %s401
        // Predicated region
        $region44: #{_resize_preprocessor_impl.1} parent=31 // pred_check
          %p403 = pneg %p106
        $region45: #{_resize_preprocessor_impl.1} parent=31 // pred_check_branch
          %405 = sbr.rel (%p403) target = $region47
        $region46: #{_resize_preprocessor_impl.1} parent=31 // pred_region
          %s406 = smul.u32 4, %s20
          %s408 = ssub.s32 2048, 2048
          %409 = vsyncadd %s399, %s408
          %s410 = smul.addr %s406, 4
          %s411 = smul.addr %s410, 128
          %s412 = scalar_lea.hbm %s3, %s411
          %s413 = sshll.u32 %s402, 4
          %s414 = int_to_ptr.vmem [resolvable:$true] %s413
          %419 = dma.vmem_to_hbm [thread:$0]  %s414, 2048, %s412, %s399, 128, 128, 8
        $region47: #{_resize_preprocessor_impl.1} parent=31 // pred_fallthru
          _
      $region32: #{_resize_preprocessor_impl.1} parent=5 // pred_fallthru
        _
      %p420 = scmp.le.s32.totalorder 2, %s15
      // Predicated region
      $region48: #{_resize_preprocessor_impl.1} parent=5 // pred_check
        %p421 = pneg %p420
      $region49: #{_resize_preprocessor_impl.1} parent=5 // pred_check_branch
        %423 = sbr.rel (%p421) target = $region51
      $region50: #{_resize_preprocessor_impl.1} parent=5 // pred_region
        %s424 = ssub.s32 %s15, 2
        // Predicated region
        $region52: #{_resize_preprocessor_impl.1} parent=50 // pred_check
          %p425 = pneg %p112
        $region53: #{_resize_preprocessor_impl.1} parent=50 // pred_check_branch
          %427 = sbr.rel (%p425) target = $region55
        $region54: #{_resize_preprocessor_impl.1} parent=50 // pred_region
          %s428 = sand.u32 %s97, 1
          %s429 = scalar_lea.sflag [#allocation5], %s428
          %s430 = sand.u32 %s97, 1
          %s431 = smul.addr %s430, 128
          %s432 = scalar_lea.vmem [#allocation6], %s431
          %433 = dma.done %s429, 2048
        $region55: #{_resize_preprocessor_impl.1} parent=50 // pred_fallthru
          _
      $region51: #{_resize_preprocessor_impl.1} parent=5 // pred_fallthru
        _
    $region6: #{_resize_preprocessor_impl.1} parent=1 // loop_footer
      %s19 = sadd.s32 1, %s15
    $region7: #{_resize_preprocessor_impl.1} parent=1 // loop_footer_branch
      %14 = sbr.rel target = $region3
    $region8: #{_resize_preprocessor_impl.1} parent=1 // loop_exit
      _
    %434 = vsyncpa [#allocation4], 1
    %s435 = scalar_lea.sflag [#allocation4], 1
    %436 = vsyncpa %s435, 1
    %437 = vsyncpa [#allocation5], 1
    %s438 = scalar_lea.sflag [#allocation5], 1
    %439 = vsyncpa %s438, 1

</llo_original>
